<compile_context>
chip_gen: v5e
topology: v5e:2x2
jax: 0.10.0
libtpu: 0.0.40
codegen_flags: <defaults>
</compile_context>

<pallas_src>
import functools

import jax
import jax.numpy as jnp
from jax.experimental import pallas as pl
from jax.experimental.pallas import tpu as pltpu


def _round_up(x, m):
    return ((x + m - 1) // m) * m


def _cpn_kernel(x_ref, w1_ref, b1_ref, w2_ref, b2_ref, o_ref, *, max_value):
    # Cast the streamed activation tile to the weights' dtype inside the
    # kernel (free VPU op; avoids a wrapper-side HBM pass over x).
    mm_dtype = w1_ref.dtype
    x = x_ref[...].astype(mm_dtype)

    # fc1 (MXU, f32 accumulation) + bias + ReLU (f32 on VPU).
    h = jnp.dot(x, w1_ref[...], preferred_element_type=jnp.float32)
    h = jnp.maximum(h + b1_ref[...], 0.0)

    # fc2 (MXU, f32 accumulation) + bias, then tanh (EUP) * max_value.
    y = jnp.dot(h.astype(mm_dtype), w2_ref[...],
                preferred_element_type=jnp.float32)
    y = y + b2_ref[...]
    o_ref[...] = (jnp.tanh(y) * max_value).astype(o_ref.dtype)


def cpn_forward(x, w1, b1, w2, b2, max_value=1.0, *,
                block_batch=4096, bf16_matmul=True, out_dtype=None):
    """Fused CPN forward.

    x: (B, state_dim); w1: (state_dim, hidden); b1: (hidden,) or (1, hidden);
    w2: (hidden, out_dim); b2: (out_dim,) or (1, out_dim).

    block_batch: target rows per grid step (auto-capped for VMEM / megacore).
    bf16_matmul: feed the MXU bf16 operands (f32 accumulation kept).
    out_dtype:   output store dtype (default: x.dtype).
    """
    B, K = x.shape
    Kw, H = w1.shape
    Hw, N = w2.shape
    assert K == Kw and H == Hw, "weight shapes inconsistent with input"

    out_dtype = x.dtype if out_dtype is None else out_dtype
    mm_dtype = jnp.bfloat16 if bf16_matmul else w1.dtype

    # Weights/biases are tiny and VMEM-resident: a one-time cast/reshape here
    # is negligible (no pass over the B-sized operands).
    w1c = w1.astype(mm_dtype)
    w2c = w2.astype(mm_dtype)
    b1c = b1.astype(jnp.float32).reshape(1, H)
    b2c = b2.astype(jnp.float32).reshape(1, N)

    # ---- batch tile selection -------------------------------------------
    # * multiple of 8 sublanes (16 when the MXU operands are bf16),
    # * at most ~ceil(B/2) so the "parallel" axis has >= 2 grid steps,
    # * capped so double-buffered x + out tiles fit a 16 MiB VMEM budget
    #   (re-derived per call; safe on v7x's 64 MiB VMEM as well as v5e/v6e).
    align = 16 if mm_dtype == jnp.bfloat16 else 8
    x_row_bytes = K * jnp.dtype(x.dtype).itemsize
    o_row_bytes = N * jnp.dtype(out_dtype).itemsize
    vmem_tile_budget = 16 * 1024 * 1024
    tb_vmem_cap = max(
        align,
        (vmem_tile_budget // (2 * (x_row_bytes + o_row_bytes))) // align * align,
    )
    tb = _round_up(min(int(block_batch), B), align)
    tb = min(tb, max(align, _round_up(pl.cdiv(B, 2), align)))
    tb = min(tb, tb_vmem_cap)
    grid_b = pl.cdiv(B, tb)

    # NOTE: the last batch block may be partial.  Garbage rows beyond B flow
    # through the matmuls/tanh before their stores are masked -- numerically
    # harmless here (no division / no trapping ops).

    flops = 2 * B * (K * H + H * N)
    transcendentals = B * N
    bytes_accessed = (
        B * x_row_bytes + B * o_row_bytes
        + w1c.size * jnp.dtype(mm_dtype).itemsize
        + w2c.size * jnp.dtype(mm_dtype).itemsize
        + (H + N) * 4
    )

    kernel = functools.partial(_cpn_kernel, max_value=float(max_value))

    return pl.pallas_call(
        kernel,
        out_shape=jax.ShapeDtypeStruct((B, N), out_dtype),
        grid_spec=pl.GridSpec(
            grid=(grid_b,),
            in_specs=[
                # Streamed batch tile of x: K equals the full feature dim, so
                # no lane padding / no extra HBM traffic.
                pl.BlockSpec((tb, K), lambda i: (i, 0)),
                # Weights/biases: constant index_map -> fetched once,
                # VMEM-resident across all grid steps.
                pl.BlockSpec((K, H), lambda i: (0, 0)),
                pl.BlockSpec((1, H), lambda i: (0, 0)),
                pl.BlockSpec((H, N), lambda i: (0, 0)),
                pl.BlockSpec((1, N), lambda i: (0, 0)),
            ],
            out_specs=pl.BlockSpec((tb, N), lambda i: (i, 0)),
        ),
        compiler_params=pltpu.CompilerParams(
            dimension_semantics=("parallel",),
            vmem_limit_bytes=32 * 1024 * 1024,
        ),
        cost_estimate=pl.CostEstimate(
            flops=flops,
            transcendentals=transcendentals,
            bytes_accessed=bytes_accessed,
        ),
    )(x, w1c, b1c, w2c, b2c)


def xavier_uniform(key, fan_in, fan_out, dtype=jnp.float32):
    # matches torch.nn.init.xavier_uniform_ (gain=1)
    limit = jnp.sqrt(6.0 / (fan_in + fan_out))
    return jax.random.uniform(key, (fan_in, fan_out), dtype, -limit, limit)


def linear_bias_init(key, fan_in, fan_out, dtype=jnp.float32):
    # matches PyTorch Linear default bias init: U(-1/sqrt(fan_in), 1/sqrt(fan_in))
    bound = 1.0 / jnp.sqrt(fan_in)
    return jax.random.uniform(key, (1, fan_out), dtype, -bound, bound)


def cpn_reference(x, w1, b1, w2, b2, max_value=1.0):
    h = jnp.maximum(x @ w1 + b1, 0.0)
    return jnp.tanh(h @ w2 + b2) * max_value


if __name__ == "__main__":
    # Small shapes consistent with the module (state_dim -> input_dim -> output_dim).
    batch, state_dim, input_dim, output_dim = 24, 16, 64, 32
    max_value = 1.0

    key = jax.random.PRNGKey(0)
    kx, kw1, kb1, kw2, kb2 = jax.random.split(key, 5)

    x = jax.random.normal(kx, (batch, state_dim), jnp.float32)
    w1 = xavier_uniform(kw1, state_dim, input_dim)
    b1 = linear_bias_init(kb1, state_dim, input_dim)
    w2 = xavier_uniform(kw2, input_dim, output_dim)
    b2 = linear_bias_init(kb2, input_dim, output_dim)

    ref = cpn_reference(x, w1, b1, w2, b2, max_value)

    # 1) f32-exact path, small block_batch to exercise the multi-step,
    #    parallel-axis pipeline (grid=(3,)).
    out_f32 = cpn_forward(x, w1, b1, w2, b2, max_value,
                          block_batch=8, bf16_matmul=False)
    out_f32 = jax.block_until_ready(out_f32)
    assert out_f32.shape == (batch, output_dim)
    assert jnp.allclose(out_f32, ref, atol=1e-5, rtol=1e-5)

    # 2) default path (bf16 MXU operands, f32 accumulation, auto tile sizing).
    out_def = cpn_forward(x, w1, b1, w2, b2, max_value)
    out_def = jax.block_until_ready(out_def)
    assert out_def.shape == (batch, output_dim)
    assert jnp.allclose(out_def, ref, atol=5e-2, rtol=5e-2)

    # 3) non-multiple-of-8 batch to exercise the masked partial last block.
    xb = x[:20]
    out_part = cpn_forward(xb, w1, b1, w2, b2, max_value,
                           block_batch=8, bf16_matmul=False)
    out_part = jax.block_until_ready(out_part)
    assert out_part.shape == (20, output_dim)
    assert jnp.allclose(out_part, cpn_reference(xb, w1, b1, w2, b2, max_value),
                        atol=1e-5, rtol=1e-5)

    print("KERNEL_OK")
</pallas_src>

<mosaic_0001>
module attributes {stable_mosaic.version = 11 : i64} {
  func.func @_cpn_kernel(%arg0: i32, %arg1: memref<8x16xf32, #tpu.memory_space<vmem>>, %arg2: memref<16x64xf32, #tpu.memory_space<vmem>>, %arg3: memref<1x64xf32, #tpu.memory_space<vmem>>, %arg4: memref<64x32xf32, #tpu.memory_space<vmem>>, %arg5: memref<1x32xf32, #tpu.memory_space<vmem>>, %arg6: memref<8x32xf32, #tpu.memory_space<vmem>>) attributes {dimension_semantics = [#tpu.dimension_semantics<parallel>], iteration_bounds = array<i64: 3>, scalar_prefetch = 0 : i64, scratch_operands = 0 : i64, tpu.core_type = #tpu.core_type<tc>, window_params = [{transform_indices = @transform_0, window_bounds = array<i64: 8, 16>}, {pipeline_mode = #tpu.pipeline_mode<synchronous>, transform_indices = @transform_1, window_bounds = array<i64: 16, 64>}, {pipeline_mode = #tpu.pipeline_mode<synchronous>, transform_indices = @transform_2, window_bounds = array<i64: 1, 64>}, {pipeline_mode = #tpu.pipeline_mode<synchronous>, transform_indices = @transform_3, window_bounds = array<i64: 64, 32>}, {pipeline_mode = #tpu.pipeline_mode<synchronous>, transform_indices = @transform_4, window_bounds = array<i64: 1, 32>}, {transform_indices = @transform_5, window_bounds = array<i64: 8, 32>}]} {
    %c0 = arith.constant 0 : index
    %c0_0 = arith.constant 0 : index
    %0 = vector.load %arg1[%c0, %c0_0] : memref<8x16xf32, #tpu.memory_space<vmem>>, vector<8x16xf32>
    %c0_1 = arith.constant 0 : index
    %c0_2 = arith.constant 0 : index
    %1 = vector.load %arg2[%c0_1, %c0_2] : memref<16x64xf32, #tpu.memory_space<vmem>>, vector<16x64xf32>
    %cst = arith.constant dense<0.000000e+00> : vector<8x64xf32>
    %2 = tpu.matmul %0, %1, %cst {dimension_numbers = #tpu.dot_dimension_numbers<[1], [0], [0], [1], [0, 0, 1, 1], [], []>} : vector<8x16xf32>, vector<16x64xf32>, vector<8x64xf32> -> vector<8x64xf32>
    %c0_3 = arith.constant 0 : index
    %c0_4 = arith.constant 0 : index
    %3 = vector.load %arg3[%c0_3, %c0_4] : memref<1x64xf32, #tpu.memory_space<vmem>>, vector<1x64xf32>
    %4 = vector.broadcast %3 : vector<1x64xf32> to vector<8x64xf32>
    %5 = arith.addf %2, %4 : vector<8x64xf32>
    %cst_5 = arith.constant 0.000000e+00 : f32
    %6 = vector.broadcast %cst_5 : f32 to vector<8x64xf32>
    %7 = arith.maximumf %5, %6 : vector<8x64xf32>
    %c0_6 = arith.constant 0 : index
    %c0_7 = arith.constant 0 : index
    %8 = vector.load %arg4[%c0_6, %c0_7] : memref<64x32xf32, #tpu.memory_space<vmem>>, vector<64x32xf32>
    %cst_8 = arith.constant dense<0.000000e+00> : vector<8x32xf32>
    %9 = tpu.matmul %7, %8, %cst_8 {dimension_numbers = #tpu.dot_dimension_numbers<[1], [0], [0], [1], [0, 0, 1, 1], [], []>} : vector<8x64xf32>, vector<64x32xf32>, vector<8x32xf32> -> vector<8x32xf32>
    %c0_9 = arith.constant 0 : index
    %c0_10 = arith.constant 0 : index
    %10 = vector.load %arg5[%c0_9, %c0_10] : memref<1x32xf32, #tpu.memory_space<vmem>>, vector<1x32xf32>
    %11 = vector.broadcast %10 : vector<1x32xf32> to vector<8x32xf32>
    %12 = arith.addf %9, %11 : vector<8x32xf32>
    %13 = math.tanh %12 : vector<8x32xf32>
    %cst_11 = arith.constant 1.000000e+00 : f32
    %14 = vector.broadcast %cst_11 : f32 to vector<8x32xf32>
    %15 = arith.mulf %13, %14 : vector<8x32xf32>
    %c0_12 = arith.constant 0 : index
    %c0_13 = arith.constant 0 : index
    %16 = vector.load %arg6[%c0_12, %c0_13] : memref<8x32xf32, #tpu.memory_space<vmem>>, vector<8x32xf32>
    tpu.vector_store %arg6[%c0_12, %c0_13], %15 {strides = array<i32>} : memref<8x32xf32, #tpu.memory_space<vmem>>, vector<8x32xf32>,
    return
  }
  func.func @transform_0(%arg0: i32) -> (i32, i32) {
    %c0_i32 = arith.constant 0 : i32
    %c0_i32_0 = arith.constant 0 : i32
    return %arg0, %c0_i32 : i32, i32
  }
  func.func @transform_1(%arg0: i32) -> (i32, i32) {
    %c0_i32 = arith.constant 0 : i32
    %c0_i32_0 = arith.constant 0 : i32
    %c0_i32_1 = arith.constant 0 : i32
    return %c0_i32, %c0_i32_0 : i32, i32
  }
  func.func @transform_2(%arg0: i32) -> (i32, i32) {
    %c0_i32 = arith.constant 0 : i32
    %c0_i32_0 = arith.constant 0 : i32
    %c0_i32_1 = arith.constant 0 : i32
    return %c0_i32, %c0_i32_0 : i32, i32
  }
  func.func @transform_3(%arg0: i32) -> (i32, i32) {
    %c0_i32 = arith.constant 0 : i32
    %c0_i32_0 = arith.constant 0 : i32
    %c0_i32_1 = arith.constant 0 : i32
    return %c0_i32, %c0_i32_0 : i32, i32
  }
  func.func @transform_4(%arg0: i32) -> (i32, i32) {
    %c0_i32 = arith.constant 0 : i32
    %c0_i32_0 = arith.constant 0 : i32
    %c0_i32_1 = arith.constant 0 : i32
    return %c0_i32, %c0_i32_0 : i32, i32
  }
  func.func @transform_5(%arg0: i32) -> (i32, i32) {
    %c0_i32 = arith.constant 0 : i32
    %c0_i32_0 = arith.constant 0 : i32
    return %arg0, %c0_i32 : i32, i32
  }
}

</mosaic_0001>

<llo_original>
// kernel: tpu_custom_call.1
$region0: #{tpu_custom_call.1}
  #allocation0 [shape = 'u32[]', space=smem, size = 0x4, offset = 0x4, fixed_abs, tag = 'smem constant byte address 0x4 - core index']
  #allocation1 [shape = 'u32[72,128]{1,0:T(1,128)}', space=vmem, size = 0x9000, scoped, tag = 'internal scratch']
  %s0 = inlined_call_operand.vmem [shape: f32[24,16], index: 0, kind: input, shape index: {}]
  %s1 = inlined_call_operand.vmem [shape: f32[16,64], index: 1, kind: input, shape index: {}]
  %s2 = inlined_call_operand.vmem [shape: f32[1,64], index: 2, kind: input, shape index: {}]
  %s3 = inlined_call_operand.vmem [shape: f32[64,32], index: 3, kind: input, shape index: {}]
  %s4 = inlined_call_operand.vmem [shape: f32[1,32], index: 4, kind: input, shape index: {}]
  %s5 = inlined_call_operand.hbm [shape: f32[24,32], index: 5, kind: output, shape index: {}]
  %s6 = sld [smem:[#allocation0]]
  $region53: #{tpu_custom_call.1} parent=0
    _
  %s8 = ssub.s32 1, %s6
  %s9 = scalar_select 0, %s8, %s6
  $region1: #{tpu_custom_call.1} parent=0
    #allocation2 [shape = 'u8[8192]{0}', space=vmem, size = 0x2000, scoped, tag = 'output window, operand 0']
    #allocation3 [shape = 's32[2]{0}', space=sflag, size = 0x8, scoped, tag = 'scoped memory for tpu_custom_call.1']
    %10 = vsyncpa [#allocation3], 0
    %s11 = scalar_lea.sflag [#allocation3], 1
    %12 = vsyncpa %s11, 0
    loop: start=0, step=1, limit=5
    $region2: #{tpu_custom_call.1} parent=1 // loop_pre_header
      _
    $region3: #{tpu_custom_call.1} parent=1 // loop_header
      %s14 = sphi 0, %s18
      %p15 = scmp.ge.s32.totalorder %s14, 5
      %s24 = sphi 0, %s26
      %s27 = sphi 0, %s24
      %s28 = sphi 0, %s27
      %s44 = sphi 0, %s28
      %s48 = sphi 0, %s48
      %s50 = sphi 0, %s48
      %s51 = sphi 0, %s50
      %s65 = sphi 0, %s51
      %s69 = sphi 0, %s69
      %s71 = sphi 0, %s69
      %s72 = sphi 0, %s71
      %s86 = sphi 0, %s72
      %s90 = sphi 0, %s90
      %s92 = sphi 0, %s90
      %s93 = sphi 0, %s92
      %s107 = sphi 0, %s93
      %s111 = sphi 0, %s111
      %s113 = sphi 0, %s111
      %s114 = sphi 0, %s113
      %s128 = sphi 0, %s114
      %s134 = sphi 0, %s136
      %s137 = sphi 0, %s134
      %s138 = sphi 0, %s137
      %s154 = sphi 0, %s138
    $region4: #{tpu_custom_call.1} parent=1 // loop_header_branch
      %17 = sbr.rel (%p15) target = $region8
    $region5: #{tpu_custom_call.1} parent=1 // loop_body
      %s19 = ssub.s32 %s14, 1
      %s20 = ssub.s32 %s14, 2
      %s21 = sadd.s32 %s14, 1
      %s22 = ssub.s32 %s14, %s21
      %p23 = scmp.eq.s32.totalorder %s22, 0
      %s25 = sadd.s32 %s24, 1
      %s26 = scalar_select %p23, %s24, %s25
      %p29 = pneg %p23
      %p30 = scmp.eq.s32.totalorder %s14, 2
      %p31 = por %p29, %p30
      %p32 = scmp.ne.s32.totalorder %s24, %s27
      %p33 = scmp.eq.s32.totalorder %s14, 0
      %p34 = por %p32, %p33
      %p35 = scmp.ne.s32.totalorder %s24, %s27
      %p36 = scmp.eq.s32.totalorder %s19, 2
      %p37 = por %p35, %p36
      %p38 = scmp.ne.s32.totalorder %s27, %s28
      %p39 = scmp.eq.s32.totalorder %s19, 0
      %p40 = por %p38, %p39
      %p41 = scmp.ne.s32.totalorder %s27, %s28
      %p42 = scmp.eq.s32.totalorder %s20, 2
      %p43 = por %p41, %p42
      %p45 = scmp.ne.s32.totalorder %s28, %s44
      %p46 = scmp.eq.s32.totalorder %s20, 0
      %p47 = por %p45, %p46
      %s49 = sadd.s32 %s48, 1
      %p52 = scmp.eq.s32.totalorder %s14, 2
      %p53 = scmp.ne.s32.totalorder %s48, %s50
      %p54 = scmp.eq.s32.totalorder %s14, 0
      %p55 = por %p53, %p54
      %p56 = scmp.ne.s32.totalorder %s48, %s50
      %p57 = scmp.eq.s32.totalorder %s19, 2
      %p58 = por %p56, %p57
      %p59 = scmp.ne.s32.totalorder %s50, %s51
      %p60 = scmp.eq.s32.totalorder %s19, 0
      %p61 = por %p59, %p60
      %p62 = scmp.ne.s32.totalorder %s50, %s51
      %p63 = scmp.eq.s32.totalorder %s20, 2
      %p64 = por %p62, %p63
      %p66 = scmp.ne.s32.totalorder %s51, %s65
      %p67 = scmp.eq.s32.totalorder %s20, 0
      %p68 = por %p66, %p67
      %s70 = sadd.s32 %s69, 1
      %p73 = scmp.eq.s32.totalorder %s14, 2
      %p74 = scmp.ne.s32.totalorder %s69, %s71
      %p75 = scmp.eq.s32.totalorder %s14, 0
      %p76 = por %p74, %p75
      %p77 = scmp.ne.s32.totalorder %s69, %s71
      %p78 = scmp.eq.s32.totalorder %s19, 2
      %p79 = por %p77, %p78
      %p80 = scmp.ne.s32.totalorder %s71, %s72
      %p81 = scmp.eq.s32.totalorder %s19, 0
      %p82 = por %p80, %p81
      %p83 = scmp.ne.s32.totalorder %s71, %s72
      %p84 = scmp.eq.s32.totalorder %s20, 2
      %p85 = por %p83, %p84
      %p87 = scmp.ne.s32.totalorder %s72, %s86
      %p88 = scmp.eq.s32.totalorder %s20, 0
      %p89 = por %p87, %p88
      %s91 = sadd.s32 %s90, 1
      %p94 = scmp.eq.s32.totalorder %s14, 2
      %p95 = scmp.ne.s32.totalorder %s90, %s92
      %p96 = scmp.eq.s32.totalorder %s14, 0
      %p97 = por %p95, %p96
      %p98 = scmp.ne.s32.totalorder %s90, %s92
      %p99 = scmp.eq.s32.totalorder %s19, 2
      %p100 = por %p98, %p99
      %p101 = scmp.ne.s32.totalorder %s92, %s93
      %p102 = scmp.eq.s32.totalorder %s19, 0
      %p103 = por %p101, %p102
      %p104 = scmp.ne.s32.totalorder %s92, %s93
      %p105 = scmp.eq.s32.totalorder %s20, 2
      %p106 = por %p104, %p105
      %p108 = scmp.ne.s32.totalorder %s93, %s107
      %p109 = scmp.eq.s32.totalorder %s20, 0
      %p110 = por %p108, %p109
      %s112 = sadd.s32 %s111, 1
      %p115 = scmp.eq.s32.totalorder %s14, 2
      %p116 = scmp.ne.s32.totalorder %s111, %s113
      %p117 = scmp.eq.s32.totalorder %s14, 0
      %p118 = por %p116, %p117
      %p119 = scmp.ne.s32.totalorder %s111, %s113
      %p120 = scmp.eq.s32.totalorder %s19, 2
      %p121 = por %p119, %p120
      %p122 = scmp.ne.s32.totalorder %s113, %s114
      %p123 = scmp.eq.s32.totalorder %s19, 0
      %p124 = por %p122, %p123
      %p125 = scmp.ne.s32.totalorder %s113, %s114
      %p126 = scmp.eq.s32.totalorder %s20, 2
      %p127 = por %p125, %p126
      %p129 = scmp.ne.s32.totalorder %s114, %s128
      %p130 = scmp.eq.s32.totalorder %s20, 0
      %p131 = por %p129, %p130
      %s132 = ssub.s32 %s14, %s21
      %p133 = scmp.eq.s32.totalorder %s132, 0
      %s135 = sadd.s32 %s134, 1
      %s136 = scalar_select %p133, %s134, %s135
      %p139 = pneg %p133
      %p140 = scmp.eq.s32.totalorder %s14, 2
      %p141 = por %p139, %p140
      %p142 = scmp.ne.s32.totalorder %s134, %s137
      %p143 = scmp.eq.s32.totalorder %s14, 0
      %p144 = por %p142, %p143
      %p145 = scmp.ne.s32.totalorder %s134, %s137
      %p146 = scmp.eq.s32.totalorder %s19, 2
      %p147 = por %p145, %p146
      %p148 = scmp.ne.s32.totalorder %s137, %s138
      %p149 = scmp.eq.s32.totalorder %s19, 0
      %p150 = por %p148, %p149
      %p151 = scmp.ne.s32.totalorder %s137, %s138
      %p152 = scmp.eq.s32.totalorder %s20, 2
      %p153 = por %p151, %p152
      %p155 = scmp.ne.s32.totalorder %s138, %s154
      %p156 = scmp.eq.s32.totalorder %s20, 0
      %p157 = por %p155, %p156
      %p158 = scmp.le.s32.totalorder 1, %s14
      %p159 = scmp.lt.s32.totalorder %s14, 4
      %p160 = pnand %p158, %p159
      %p161 = pneg %p160
      // Predicated region
      $region9: #{tpu_custom_call.1} parent=5 // pred_check
        _
      $region10: #{tpu_custom_call.1} parent=5 // pred_check_branch
        %163 = sbr.rel (%p160) target = $region12
      $region11: #{tpu_custom_call.1} parent=5 // pred_region
        %s164 = ssub.s32 %s14, 1
        // Predicated region
        $region13: #{tpu_custom_call.1} parent=11 // pred_check
          %p165 = pneg %p61
        $region14: #{tpu_custom_call.1} parent=11 // pred_check_branch
          %167 = sbr.rel (%p165) target = $region16
        $region15: #{tpu_custom_call.1} parent=11 // pred_region
          _
        $region16: #{tpu_custom_call.1} parent=11 // pred_fallthru
          _
        // Predicated region
        $region17: #{tpu_custom_call.1} parent=11 // pred_check
          %p168 = pneg %p82
        $region18: #{tpu_custom_call.1} parent=11 // pred_check_branch
          %170 = sbr.rel (%p168) target = $region20
        $region19: #{tpu_custom_call.1} parent=11 // pred_region
          _
        $region20: #{tpu_custom_call.1} parent=11 // pred_fallthru
          _
        // Predicated region
        $region21: #{tpu_custom_call.1} parent=11 // pred_check
          %p171 = pneg %p103
        $region22: #{tpu_custom_call.1} parent=11 // pred_check_branch
          %173 = sbr.rel (%p171) target = $region24
        $region23: #{tpu_custom_call.1} parent=11 // pred_region
          _
        $region24: #{tpu_custom_call.1} parent=11 // pred_fallthru
          _
        // Predicated region
        $region25: #{tpu_custom_call.1} parent=11 // pred_check
          %p174 = pneg %p124
        $region26: #{tpu_custom_call.1} parent=11 // pred_check_branch
          %176 = sbr.rel (%p174) target = $region28
        $region27: #{tpu_custom_call.1} parent=11 // pred_region
          _
        $region28: #{tpu_custom_call.1} parent=11 // pred_fallthru
          _
      $region12: #{tpu_custom_call.1} parent=5 // pred_fallthru
        _
      %p177 = scmp.lt.s32.totalorder %s14, 3
      // Predicated region
      $region29: #{tpu_custom_call.1} parent=5 // pred_check
        %p178 = pneg %p177
      $region30: #{tpu_custom_call.1} parent=5 // pred_check_branch
        %180 = sbr.rel (%p178) target = $region32
      $region31: #{tpu_custom_call.1} parent=5 // pred_region
        // Predicated region
        $region33: #{tpu_custom_call.1} parent=31 // pred_check
          %p181 = pneg %p34
        $region34: #{tpu_custom_call.1} parent=31 // pred_check_branch
          %183 = sbr.rel (%p181) target = $region36
        $region35: #{tpu_custom_call.1} parent=31 // pred_region
          %p184 = scmp.lt.s32.totalorder %s14, 2
          %s185 = scalar_select %p184, %s14, 2
          %s186 = smul.addr %s185, 8
          %s187 = scalar_lea.vmem %s0, %s186
        $region36: #{tpu_custom_call.1} parent=31 // pred_fallthru
          _
      $region32: #{tpu_custom_call.1} parent=5 // pred_fallthru
        _
      %p188 = scmp.le.s32.totalorder 1, %s14
      %p189 = scmp.lt.s32.totalorder %s14, 4
      %p190 = pnand %p188, %p189
      %p191 = pneg %p190
      // Predicated region
      $region37: #{tpu_custom_call.1} parent=5 // pred_check
        _
      $region38: #{tpu_custom_call.1} parent=5 // pred_check_branch
        %193 = sbr.rel (%p190) target = $region40
      $region39: #{tpu_custom_call.1} parent=5 // pred_region
        %s194 = ssub.s32 %s14, 1
        %p195 = scmp.lt.s32.totalorder %s19, 2
        %s196 = scalar_select %p195, %s19, 2
        %s197 = smul.addr %s196, 8
        %s198 = scalar_lea.vmem %s0, %s197
        %p199 = pneg %p40
        %p200 = pneg %p37
        %p201 = pneg %p61
        %p202 = pneg %p58
        %p203 = pneg %p82
        %p204 = pneg %p79
        %p205 = pneg %p103
        %p206 = pneg %p100
        %p207 = pneg %p124
        %p208 = pneg %p121
        %p209 = pneg %p150
        %p210 = pneg %p147
        %s211 = sand.u32 %s137, 1
        %s212 = scalar_lea.sflag [#allocation3], %s211
        %s213 = sand.u32 %s137, 1
        %s214 = smul.addr %s213, 8
        %s215 = scalar_lea.vmem [#allocation2], %s214
        %p216 = scmp.lt.s32.totalorder %s19, 2
        %s217 = scalar_select %p216, %s19, 2
        %s218 = smul.addr %s217, 8
        %s219 = scalar_lea.vmem %s0, %s218
        %v220 = vld [vmem:[%s219] sm:$0xff]
        %v221 = vld [vmem:[%s1] sm:$0xff]
        %v222 = vld [vmem:[%s1 + $0x8] sm:$0xff]
        %v223 = vld [vmem:[%s2] sm:$0x1]
        %v225 = vperm.slane %v223, 0
        %vm227 = vcmask 130048
        %v229 = vsel %vm227, %v220, 0
        %231 = vmatpush.msra.mxu0 0.0
        %232 = vmatpush.msra.mxu0 0.0
        %233 = vmatpush.msra.mxu0 0.0
        %234 = vmatpush.msra.mxu0 0.0
        %235 = vmatpush.msra.mxu0 0.0
        %236 = vmatpush.msra.mxu0 0.0
        %237 = vmatpush.msra.mxu0 0.0
        %238 = vmatpush.msra.mxu0 0.0
        %239 = vmatpush.msra.mxu0 0.0
        %240 = vmatpush.msra.mxu0 0.0
        %241 = vmatpush.msra.mxu0 0.0
        %242 = vmatpush.msra.mxu0 0.0
        %243 = vmatpush.msra.mxu0 0.0
        %244 = vmatpush.msra.mxu0 0.0
        %245 = vmatpush.msra.mxu0 %v222
        %246 = vmatpush.msra.mxu0 %v221
        %247 = vmatmul.f32.gmra.mxu0 %v229
        %v248 = vpop.f32.mrf.mxu0
        %v249 = vadd.f32 %v225, %v248
        %250 = vdwg.mxu0
        %v251 = vmax.f32 %v249, 0.0
        %v252 = vld [vmem:[%s3] sm:$0xff]
        %v253 = vld [vmem:[%s3 + $0x8] sm:$0xff]
        %v254 = vld [vmem:[%s3 + $0x10] sm:$0xff]
        %v255 = vld [vmem:[%s3 + $0x18] sm:$0xff]
        %v256 = vld [vmem:[%s3 + $0x20] sm:$0xff]
        %v257 = vld [vmem:[%s3 + $0x28] sm:$0xff]
        %v258 = vld [vmem:[%s3 + $0x30] sm:$0xff]
        %v259 = vld [vmem:[%s3 + $0x38] sm:$0xff]
        %v260 = vld [vmem:[%s4] sm:$0x1]
        %v262 = vperm.slane %v260, 0
        %vm264 = vcmask 523264
        %v266 = vsel %vm264, %v251, 0
        %268 = vmatpush.msra.mxu0 0.0
        %269 = vmatpush.msra.mxu0 0.0
        %270 = vmatpush.msra.mxu0 0.0
        %271 = vmatpush.msra.mxu0 0.0
        %272 = vmatpush.msra.mxu0 0.0
        %273 = vmatpush.msra.mxu0 0.0
        %274 = vmatpush.msra.mxu0 0.0
        %275 = vmatpush.msra.mxu0 0.0
        %276 = vmatpush.msra.mxu0 %v259
        %277 = vmatpush.msra.mxu0 %v258
        %278 = vmatpush.msra.mxu0 %v257
        %279 = vmatpush.msra.mxu0 %v256
        %280 = vmatpush.msra.mxu0 %v255
        %281 = vmatpush.msra.mxu0 %v254
        %282 = vmatpush.msra.mxu0 %v253
        %283 = vmatpush.msra.mxu0 %v252
        %284 = vmatmul.f32.gmra.mxu0 %v266
        %v285 = vpop.f32.mrf.mxu0
        %v286 = vadd.f32 %v262, %v285
        %287 = vdwg.mxu0
        %v288 = vtanh.pop %v286
        %vm289 = vcmask 261120
        %290 = vst.msk [vmem:[%s215] sm:$0xff] %vm289, %v288
        %s291 = sand.u32 %s137, 1
        %s292 = scalar_lea.sflag [#allocation3], %s291
        %s293 = sand.u32 %s137, 1
        %s294 = smul.addr %s293, 8
        %s295 = scalar_lea.vmem [#allocation2], %s294
        // Predicated region
        $region41: #{tpu_custom_call.1} parent=39 // pred_check
          %p296 = pneg %p147
        $region42: #{tpu_custom_call.1} parent=39 // pred_check_branch
          %298 = sbr.rel (%p296) target = $region44
        $region43: #{tpu_custom_call.1} parent=39 // pred_region
          %300 = vsyncadd %s292, 0
          %s301 = smul.addr %s19, 8
          %s302 = scalar_lea.hbm %s5, %s301
          %s304 = sshll.u32 %s295, 4
          %s305 = int_to_ptr.vmem [resolvable:$true] %s304
          %s306 = sshll.u32 %s302, 4
          %s307 = int_to_ptr.hbm [resolvable:$true] %s306
          %309 = dma.vmem_to_hbm [thread:$0]  %s305, 128, %s307, %s292
        $region44: #{tpu_custom_call.1} parent=39 // pred_fallthru
          _
      $region40: #{tpu_custom_call.1} parent=5 // pred_fallthru
        _
      %p310 = scmp.le.s32.totalorder 2, %s14
      // Predicated region
      $region45: #{tpu_custom_call.1} parent=5 // pred_check
        %p311 = pneg %p310
      $region46: #{tpu_custom_call.1} parent=5 // pred_check_branch
        %313 = sbr.rel (%p311) target = $region48
      $region47: #{tpu_custom_call.1} parent=5 // pred_region
        %s314 = ssub.s32 %s14, 2
        // Predicated region
        $region49: #{tpu_custom_call.1} parent=47 // pred_check
          %p315 = pneg %p153
        $region50: #{tpu_custom_call.1} parent=47 // pred_check_branch
          %317 = sbr.rel (%p315) target = $region52
        $region51: #{tpu_custom_call.1} parent=47 // pred_region
          %s318 = sand.u32 %s138, 1
          %s319 = scalar_lea.sflag [#allocation3], %s318
          %s320 = sand.u32 %s138, 1
          %s321 = smul.addr %s320, 8
          %s322 = scalar_lea.vmem [#allocation2], %s321
          %324 = dma.done %s319, 128
        $region52: #{tpu_custom_call.1} parent=47 // pred_fallthru
          _
      $region48: #{tpu_custom_call.1} parent=5 // pred_fallthru
        _
    $region6: #{tpu_custom_call.1} parent=1 // loop_footer
      %s18 = sadd.s32 1, %s14
    $region7: #{tpu_custom_call.1} parent=1 // loop_footer_branch
      %13 = sbr.rel target = $region3
    $region8: #{tpu_custom_call.1} parent=1 // loop_exit
      _
    %325 = vsyncpa [#allocation3], 1
    %s326 = scalar_lea.sflag [#allocation3], 1
    %327 = vsyncpa %s326, 1

</llo_original>
